<compile_context>
chip_gen: v6e
topology: v6e:2x2x1
jax: 0.10.0
libtpu: 0.0.40
codegen_flags: <defaults>
</compile_context>

<pallas_src>
import math

import jax
import jax.numpy as jnp
from jax.experimental import pallas as pl
from jax.experimental.pallas import tpu as pltpu


def _round_up(x, m):
    return (x + m - 1) // m * m


def _hard_sigmoid(x):
    return jnp.clip(0.2 * x + 0.5, 0.0, 1.0)


# ----------------------------------------------------------------------------
# Kernel
# ----------------------------------------------------------------------------
def lstm_cell_kernel(z_ref, w_ref, b_ref, c_ref, hy_ref, cy_ref, acc_ref):
    """One (batch-tile, hidden-tile) output block, reduced over K tiles.

    z_ref : (tb, tk)        fused [x, h] activations
    w_ref : (tk, 4*th)      fused weights, gates interleaved per hidden tile
    b_ref : (1, 4*th)       fused bias (f32)
    c_ref : (tb, th)        previous cell state
    acc_ref: (tb, 4*th) f32 gate accumulator (persists across K grid axis)
    """
    k = pl.program_id(2)

    # Fold the bias into the accumulator initialization.
    @pl.when(k == 0)
    def _():
        acc_ref[...] = jnp.broadcast_to(
            b_ref[...].astype(jnp.float32), acc_ref.shape)

    acc_ref[...] += jnp.dot(z_ref[...], w_ref[...],
                            preferred_element_type=jnp.float32)

    # Epilogue: gate nonlinearities + state update, all in f32.
    @pl.when(k == pl.num_programs(2) - 1)
    def _():
        th = hy_ref.shape[1]
        gates = acc_ref[...]                       # (tb, 4*th), lane-aligned
        ingate = _hard_sigmoid(gates[:, 0 * th:1 * th])
        forgetgate = _hard_sigmoid(gates[:, 1 * th:2 * th])
        cellgate = jnp.tanh(gates[:, 2 * th:3 * th])
        outgate = _hard_sigmoid(gates[:, 3 * th:4 * th])

        c_prev = c_ref[...].astype(jnp.float32)
        cy = forgetgate * c_prev + ingate * cellgate
        hy = outgate * jnp.tanh(cy)

        cy_ref[...] = cy.astype(cy_ref.dtype)
        hy_ref[...] = hy.astype(hy_ref.dtype)


# ----------------------------------------------------------------------------
# One-time weight preparation (call once, reuse across timesteps)
# ----------------------------------------------------------------------------
def prepare_lstm_weights(w_ih, w_hh, b_ih, b_hh, *, compute_dtype=None,
                         hidden_tile=None, k_tile=None):
    """Fuse/transpose/re-tile the parameters ONCE.

    Returns (w_fused, bias_fused, meta) where
      w_fused: (K_pad, nh*4*th) with columns grouped as
               [tile0: i|f|g|o, tile1: i|f|g|o, ...]  (each gate block = th lanes)
      bias_fused: (1, nh*4*th) float32
    """
    four_h, input_size = w_ih.shape
    hidden = four_h // 4
    assert w_hh.shape == (four_h, hidden)

    # Hidden-tile size: multiple of 128 lanes, capped for VMEM headroom.
    th = hidden_tile if hidden_tile is not None else min(
        _round_up(hidden, 128), 512)
    th = _round_up(th, 128)
    h_pad = _round_up(hidden, th)
    nh = h_pad // th

    k_raw = input_size + hidden
    tk = k_tile if k_tile is not None else min(_round_up(k_raw, 128), 512)
    tk = _round_up(tk, 128)
    k_pad = _round_up(k_raw, tk)

    # Fuse [W_ih | W_hh] along the contraction axis, transpose once: (K, 4H).
    w_t = jnp.concatenate([w_ih, w_hh], axis=1).T          # (k_raw, 4*hidden)

    # Regroup columns so each hidden tile's 4 gates are contiguous:
    # (K,4,H) -pad-> (K,4,H_pad) -> (K,4,nh,th) -> (K,nh,4,th) -> (K,nh*4*th)
    w_t = w_t.reshape(k_raw, 4, hidden)
    w_t = jnp.pad(w_t, ((0, 0), (0, 0), (0, h_pad - hidden)))
    w_t = w_t.reshape(k_raw, 4, nh, th).transpose(0, 2, 1, 3)
    w_t = w_t.reshape(k_raw, nh * 4 * th)
    w_t = jnp.pad(w_t, ((0, k_pad - k_raw), (0, 0)))
    if compute_dtype is not None:
        w_t = w_t.astype(compute_dtype)

    bias = (b_ih + b_hh).astype(jnp.float32).reshape(4, hidden)
    bias = jnp.pad(bias, ((0, 0), (0, h_pad - hidden)))
    bias = bias.reshape(4, nh, th).transpose(1, 0, 2).reshape(1, nh * 4 * th)

    meta = dict(input_size=input_size, hidden=hidden, h_pad=h_pad, th=th,
                nh=nh, k_raw=k_raw, k_pad=k_pad, tk=tk,
                compute_dtype=compute_dtype)
    return w_t, bias, meta


# ----------------------------------------------------------------------------
# Per-step cell
# ----------------------------------------------------------------------------
def lstm_cell(x, h, c, packed):
    """x:(B,I), h/c:(B,H), packed = prepare_lstm_weights(...). Returns (hy, cy)."""
    w_t, bias, meta = packed
    batch = x.shape[0]
    hidden, h_pad, th, nh = meta["hidden"], meta["h_pad"], meta["th"], meta["nh"]
    k_raw, k_pad, tk = meta["k_raw"], meta["k_pad"], meta["tk"]
    cdt = meta["compute_dtype"]
    out_dtype = h.dtype

    tb = min(_round_up(batch, 8), 128)
    b_pad = _round_up(batch, tb)
    nb = b_pad // tb
    nk = k_pad // tk

    # Fused, padded activations (cheap: activations << weights).
    z = jnp.concatenate([x, h], axis=1)                       # (B, I+H)
    z = jnp.pad(z, ((0, b_pad - batch), (0, k_pad - k_raw)))
    if cdt is not None:
        z = z.astype(cdt)
    c_p = jnp.pad(c, ((0, b_pad - batch), (0, h_pad - hidden))).astype(out_dtype)

    out_shapes = (jax.ShapeDtypeStruct((b_pad, h_pad), out_dtype),   # hy
                  jax.ShapeDtypeStruct((b_pad, h_pad), out_dtype))   # cy

    hy, cy = pl.pallas_call(
        lstm_cell_kernel,
        out_shape=out_shapes,
        grid=(nb, nh, nk),
        in_specs=[
            pl.BlockSpec((tb, tk), lambda b, j, k: (b, k)),       # z
            pl.BlockSpec((tk, 4 * th), lambda b, j, k: (k, j)),   # fused weights
            pl.BlockSpec((1, 4 * th), lambda b, j, k: (0, j)),    # fused bias
            pl.BlockSpec((tb, th), lambda b, j, k: (b, j)),       # c
        ],
        out_specs=(pl.BlockSpec((tb, th), lambda b, j, k: (b, j)),
                   pl.BlockSpec((tb, th), lambda b, j, k: (b, j))),
        scratch_shapes=[pltpu.VMEM((tb, 4 * th), jnp.float32)],
        input_output_aliases={3: 1},   # c -> cy : in-place state update
        compiler_params=pltpu.CompilerParams(
            dimension_semantics=("parallel", "parallel", "arbitrary"),
            vmem_limit_bytes=32 * 1024 * 1024),
    )(z, w_t, bias, c_p)

    return hy[:batch, :hidden], cy[:batch, :hidden]


# ----------------------------------------------------------------------------
# Pure-JAX reference (mirrors the PyTorch module)
# ----------------------------------------------------------------------------
def reference_lstm_cell(x, h, c, w_ih, w_hh, b_ih, b_hh):
    gates = x @ w_ih.T + b_ih + h @ w_hh.T + b_hh
    i, f, g, o = jnp.split(gates, 4, axis=1)
    i = _hard_sigmoid(i)
    f = _hard_sigmoid(f)
    g = jnp.tanh(g)
    o = _hard_sigmoid(o)
    cy = f * c + i * g
    hy = o * jnp.tanh(cy)
    return hy, cy


if __name__ == "__main__":
    batch, input_size, hidden_size = 2, 16, 32
    key = jax.random.PRNGKey(0)
    ks = jax.random.split(key, 7)
    stdv = 1.0 / math.sqrt(hidden_size)

    x = jax.random.normal(ks[0], (batch, input_size), jnp.float32)
    h0 = jax.random.normal(ks[1], (batch, hidden_size), jnp.float32)
    c0 = jax.random.normal(ks[2], (batch, hidden_size), jnp.float32)
    w_ih = jax.random.uniform(ks[3], (4 * hidden_size, input_size),
                              jnp.float32, -stdv, stdv)
    w_hh = jax.random.uniform(ks[4], (4 * hidden_size, hidden_size),
                              jnp.float32, -stdv, stdv)
    b_ih = jax.random.uniform(ks[5], (4 * hidden_size,), jnp.float32,
                              -stdv, stdv)
    b_hh = jax.random.uniform(ks[6], (4 * hidden_size,), jnp.float32,
                              -stdv, stdv)

    # One-time prep (per-step calls never transpose / copy the weights).
    # Pass compute_dtype=jnp.bfloat16 here to halve weight HBM traffic.
    packed = prepare_lstm_weights(w_ih, w_hh, b_ih, b_hh, compute_dtype=None)

    hy, cy = lstm_cell(x, h0, c0, packed)
    jax.block_until_ready((hy, cy))

    hy_ref, cy_ref = reference_lstm_cell(x, h0, c0, w_ih, w_hh, b_ih, b_hh)
    assert jnp.allclose(hy, hy_ref, atol=1e-4, rtol=1e-4), "hy mismatch"
    assert jnp.allclose(cy, cy_ref, atol=1e-4, rtol=1e-4), "cy mismatch"

    print("KERNEL_OK")
</pallas_src>

<mosaic_0001>
module attributes {stable_mosaic.version = 11 : i64} {
  func.func @lstm_cell_kernel(%arg0: i32, %arg1: i32, %arg2: i32, %arg3: memref<8x128xf32, #tpu.memory_space<vmem>>, %arg4: memref<128x512xf32, #tpu.memory_space<vmem>>, %arg5: memref<1x512xf32, #tpu.memory_space<vmem>>, %arg6: memref<8x128xf32, #tpu.memory_space<vmem>>, %arg7: memref<8x128xf32, #tpu.memory_space<vmem>>, %arg8: memref<8x128xf32, #tpu.memory_space<vmem>>, %arg9: memref<8x512xf32, #tpu.memory_space<vmem>>) attributes {dimension_semantics = [#tpu.dimension_semantics<parallel>, #tpu.dimension_semantics<parallel>, #tpu.dimension_semantics<arbitrary>], iteration_bounds = array<i64: 1, 1, 1>, scalar_prefetch = 0 : i64, scratch_operands = 1 : i64, tpu.core_type = #tpu.core_type<tc>, window_params = [{transform_indices = @transform_0, window_bounds = array<i64: 8, 128>}, {transform_indices = @transform_1, window_bounds = array<i64: 128, 512>}, {transform_indices = @transform_2, window_bounds = array<i64: 1, 512>}, {transform_indices = @transform_3, window_bounds = array<i64: 8, 128>}, {transform_indices = @transform_4, window_bounds = array<i64: 8, 128>}, {transform_indices = @transform_5, window_bounds = array<i64: 8, 128>}]} {
    %c0_i32 = arith.constant 0 : i32
    %0 = arith.cmpi eq, %arg2, %c0_i32 : i32
    %1 = arith.extui %0 : i1 to i32
    %c0_i32_0 = arith.constant 0 : i32
    %2 = arith.cmpi ne, %1, %c0_i32_0 : i32
    scf.if %2 {
      %c0_10 = arith.constant 0 : index
      %c0_11 = arith.constant 0 : index
      %12 = vector.load %arg5[%c0_10, %c0_11] : memref<1x512xf32, #tpu.memory_space<vmem>>, vector<1x512xf32>
      %13 = vector.shape_cast %12 : vector<1x512xf32> to vector<1x512xf32>
      %14 = vector.broadcast %13 : vector<1x512xf32> to vector<8x512xf32>
      %c0_12 = arith.constant 0 : index
      %c0_13 = arith.constant 0 : index
      %15 = vector.load %arg9[%c0_12, %c0_13] : memref<8x512xf32, #tpu.memory_space<vmem>>, vector<8x512xf32>
      tpu.vector_store %arg9[%c0_12, %c0_13], %14 {strides = array<i32>} : memref<8x512xf32, #tpu.memory_space<vmem>>, vector<8x512xf32>,
    } else {
    }
    %c0 = arith.constant 0 : index
    %c0_1 = arith.constant 0 : index
    %3 = vector.load %arg9[%c0, %c0_1] : memref<8x512xf32, #tpu.memory_space<vmem>>, vector<8x512xf32>
    %c0_2 = arith.constant 0 : index
    %c0_3 = arith.constant 0 : index
    %4 = vector.load %arg3[%c0_2, %c0_3] : memref<8x128xf32, #tpu.memory_space<vmem>>, vector<8x128xf32>
    %c0_4 = arith.constant 0 : index
    %c0_5 = arith.constant 0 : index
    %5 = vector.load %arg4[%c0_4, %c0_5] : memref<128x512xf32, #tpu.memory_space<vmem>>, vector<128x512xf32>
    %cst = arith.constant dense<0.000000e+00> : vector<8x512xf32>
    %6 = tpu.matmul %4, %5, %cst {dimension_numbers = #tpu.dot_dimension_numbers<[1], [0], [0], [1], [0, 0, 1, 1], [], []>} : vector<8x128xf32>, vector<128x512xf32>, vector<8x512xf32> -> vector<8x512xf32>
    %7 = arith.addf %3, %6 : vector<8x512xf32>
    %c0_6 = arith.constant 0 : index
    %c0_7 = arith.constant 0 : index
    %8 = vector.load %arg9[%c0_6, %c0_7] : memref<8x512xf32, #tpu.memory_space<vmem>>, vector<8x512xf32>
    tpu.vector_store %arg9[%c0_6, %c0_7], %7 {strides = array<i32>} : memref<8x512xf32, #tpu.memory_space<vmem>>, vector<8x512xf32>,
    %c0_i32_8 = arith.constant 0 : i32
    %9 = arith.cmpi eq, %arg2, %c0_i32_8 : i32
    %10 = arith.extui %9 : i1 to i32
    %c0_i32_9 = arith.constant 0 : i32
    %11 = arith.cmpi ne, %10, %c0_i32_9 : i32
    scf.if %11 {
      %c0_10 = arith.constant 0 : index
      %c0_11 = arith.constant 0 : index
      %12 = vector.load %arg9[%c0_10, %c0_11] : memref<8x512xf32, #tpu.memory_space<vmem>>, vector<8x512xf32>
      %13 = vector.extract_strided_slice %12 {offsets = [0, 0], sizes = [8, 128], strides = [1, 1]} : vector<8x512xf32> to vector<8x128xf32>
      %cst_12 = arith.constant 2.000000e-01 : f32
      %14 = vector.broadcast %cst_12 : f32 to vector<8x128xf32>
      %15 = arith.mulf %14, %13 : vector<8x128xf32>
      %cst_13 = arith.constant 5.000000e-01 : f32
      %16 = vector.broadcast %cst_13 : f32 to vector<8x128xf32>
      %17 = arith.addf %15, %16 : vector<8x128xf32>
      %cst_14 = arith.constant 0.000000e+00 : f32
      %cst_15 = arith.constant 1.000000e+00 : f32
      %18 = vector.broadcast %cst_14 : f32 to vector<8x128xf32>
      %19 = arith.maximumf %18, %17 : vector<8x128xf32>
      %20 = vector.broadcast %cst_15 : f32 to vector<8x128xf32>
      %21 = arith.minimumf %20, %19 : vector<8x128xf32>
      %22 = vector.extract_strided_slice %12 {offsets = [0, 128], sizes = [8, 128], strides = [1, 1]} : vector<8x512xf32> to vector<8x128xf32>
      %cst_16 = arith.constant 2.000000e-01 : f32
      %23 = vector.broadcast %cst_16 : f32 to vector<8x128xf32>
      %24 = arith.mulf %23, %22 : vector<8x128xf32>
      %cst_17 = arith.constant 5.000000e-01 : f32
      %25 = vector.broadcast %cst_17 : f32 to vector<8x128xf32>
      %26 = arith.addf %24, %25 : vector<8x128xf32>
      %cst_18 = arith.constant 0.000000e+00 : f32
      %cst_19 = arith.constant 1.000000e+00 : f32
      %27 = vector.broadcast %cst_18 : f32 to vector<8x128xf32>
      %28 = arith.maximumf %27, %26 : vector<8x128xf32>
      %29 = vector.broadcast %cst_19 : f32 to vector<8x128xf32>
      %30 = arith.minimumf %29, %28 : vector<8x128xf32>
      %31 = vector.extract_strided_slice %12 {offsets = [0, 256], sizes = [8, 128], strides = [1, 1]} : vector<8x512xf32> to vector<8x128xf32>
      %32 = math.tanh %31 : vector<8x128xf32>
      %33 = vector.extract_strided_slice %12 {offsets = [0, 384], sizes = [8, 128], strides = [1, 1]} : vector<8x512xf32> to vector<8x128xf32>
      %cst_20 = arith.constant 2.000000e-01 : f32
      %34 = vector.broadcast %cst_20 : f32 to vector<8x128xf32>
      %35 = arith.mulf %34, %33 : vector<8x128xf32>
      %cst_21 = arith.constant 5.000000e-01 : f32
      %36 = vector.broadcast %cst_21 : f32 to vector<8x128xf32>
      %37 = arith.addf %35, %36 : vector<8x128xf32>
      %cst_22 = arith.constant 0.000000e+00 : f32
      %cst_23 = arith.constant 1.000000e+00 : f32
      %38 = vector.broadcast %cst_22 : f32 to vector<8x128xf32>
      %39 = arith.maximumf %38, %37 : vector<8x128xf32>
      %40 = vector.broadcast %cst_23 : f32 to vector<8x128xf32>
      %41 = arith.minimumf %40, %39 : vector<8x128xf32>
      %c0_24 = arith.constant 0 : index
      %c0_25 = arith.constant 0 : index
      %42 = vector.load %arg6[%c0_24, %c0_25] : memref<8x128xf32, #tpu.memory_space<vmem>>, vector<8x128xf32>
      %43 = arith.mulf %30, %42 : vector<8x128xf32>
      %44 = arith.mulf %21, %32 : vector<8x128xf32>
      %45 = arith.addf %43, %44 : vector<8x128xf32>
      %46 = math.tanh %45 : vector<8x128xf32>
      %47 = arith.mulf %41, %46 : vector<8x128xf32>
      %c0_26 = arith.constant 0 : index
      %c0_27 = arith.constant 0 : index
      %48 = vector.load %arg8[%c0_26, %c0_27] : memref<8x128xf32, #tpu.memory_space<vmem>>, vector<8x128xf32>
      tpu.vector_store %arg8[%c0_26, %c0_27], %45 {strides = array<i32>} : memref<8x128xf32, #tpu.memory_space<vmem>>, vector<8x128xf32>,
      %c0_28 = arith.constant 0 : index
      %c0_29 = arith.constant 0 : index
      %49 = vector.load %arg7[%c0_28, %c0_29] : memref<8x128xf32, #tpu.memory_space<vmem>>, vector<8x128xf32>
      tpu.vector_store %arg7[%c0_28, %c0_29], %47 {strides = array<i32>} : memref<8x128xf32, #tpu.memory_space<vmem>>, vector<8x128xf32>,
    } else {
    }
    return
  }
  func.func @transform_0(%arg0: i32, %arg1: i32, %arg2: i32) -> (i32, i32) {
    %c0_i32 = arith.constant 0 : i32
    return %arg0, %arg2 : i32, i32
  }
  func.func @transform_1(%arg0: i32, %arg1: i32, %arg2: i32) -> (i32, i32) {
    %c0_i32 = arith.constant 0 : i32
    return %arg2, %arg1 : i32, i32
  }
  func.func @transform_2(%arg0: i32, %arg1: i32, %arg2: i32) -> (i32, i32) {
    %c0_i32 = arith.constant 0 : i32
    %c0_i32_0 = arith.constant 0 : i32
    return %c0_i32, %arg1 : i32, i32
  }
  func.func @transform_3(%arg0: i32, %arg1: i32, %arg2: i32) -> (i32, i32) {
    %c0_i32 = arith.constant 0 : i32
    return %arg0, %arg1 : i32, i32
  }
  func.func @transform_4(%arg0: i32, %arg1: i32, %arg2: i32) -> (i32, i32) {
    %c0_i32 = arith.constant 0 : i32
    return %arg0, %arg1 : i32, i32
  }
  func.func @transform_5(%arg0: i32, %arg1: i32, %arg2: i32) -> (i32, i32) {
    %c0_i32 = arith.constant 0 : i32
    return %arg0, %arg1 : i32, i32
  }
}

</mosaic_0001>

<llo_original>
// kernel: tpu_custom_call.1
$region0: #{tpu_custom_call.1}
  #allocation0 [shape = 'u32[]', space=smem, size = 0x4, offset = 0x4, fixed_abs, tag = 'smem constant byte address 0x4 - core index']
  #allocation1 [shape = 'u32[144,128]{1,0:T(1,128)}', space=vmem, size = 0x12000, scoped, tag = 'internal scratch']
  #allocation2 [shape = 'f32[8,512]{1,0:T(8,128)}', space=vmem, size = 0x4000, scoped, tag = 'scratch operand']
  %s0 = inlined_call_operand.vmem [shape: f32[8,128], index: 0, kind: input, shape index: {}]
  %s1 = inlined_call_operand.hbm [shape: f32[128,512], index: 1, kind: input, shape index: {}]
  %s2 = inlined_call_operand.vmem [shape: f32[1,512], index: 2, kind: input, shape index: {}]
  %s3 = inlined_call_operand.hbm [shape: f32[8,128], index: 3, kind: input, shape index: {}, may-alias: {3,5}]
  %s4 = inlined_call_operand.hbm [shape: f32[8,128], index: 4, kind: output, shape index: {0}]
  %s5 = inlined_call_operand.hbm [shape: f32[8,128], index: 5, kind: output, shape index: {1}, may-alias: {3,5}]
  %6 = xla_tuple %s4, %s5
  %s7 = sld [smem:[#allocation0]]
  $region50: #{tpu_custom_call.1} parent=0
    _
  %s9 = ssub.s32 1, %s7
  %s10 = scalar_select 0, %s9, %s7
  $region1: #{tpu_custom_call.1} parent=0
    #allocation3 [shape = 'u8[262144]{0}', space=vmem, size = 0x40000, scoped, tag = 'input window, operand 1, single buffered']
    #allocation4 [shape = 's32[1]{0}', space=sflag, size = 0x4, scoped, tag = 'scoped memory for tpu_custom_call.1']
    #allocation5 [shape = 's32[1]{0}', space=sflag, size = 0x4, scoped, tag = 'scoped memory for tpu_custom_call.1']
    #allocation6 [shape = 'u8[4096]{0}', space=vmem, size = 0x1000, scoped, tag = 'input window, operand 3, single buffered']
    #allocation7 [shape = 's32[1]{0}', space=sflag, size = 0x4, scoped, tag = 'scoped memory for tpu_custom_call.1']
    #allocation8 [shape = 'u8[4096]{0}', space=vmem, size = 0x1000, scoped, tag = 'output window, operand 0, single buffered']
    #allocation9 [shape = 'u8[4096]{0}', space=vmem, size = 0x1000, scoped, tag = 'output window, operand 1, single buffered']
    #allocation10 [shape = 's32[1]{0}', space=sflag, size = 0x4, scoped, tag = 'scoped memory for tpu_custom_call.1']
    %11 = vsyncpa [#allocation4], 0
    %12 = vsyncpa [#allocation7], 0
    %13 = vsyncpa [#allocation5], 0
    %14 = vsyncpa [#allocation10], 0
    // Predicated region
    $region2: #{tpu_custom_call.1} parent=1 // pred_check
      _
    $region3: #{tpu_custom_call.1} parent=1 // pred_check_branch
      %16 = sbr.rel (0) target = $region5
    $region4: #{tpu_custom_call.1} parent=1 // pred_region
      _
    $region5: #{tpu_custom_call.1} parent=1 // pred_fallthru
      _
    // Predicated region
    $region6: #{tpu_custom_call.1} parent=1 // pred_check
      _
    $region7: #{tpu_custom_call.1} parent=1 // pred_check_branch
      %18 = sbr.rel (0) target = $region9
    $region8: #{tpu_custom_call.1} parent=1 // pred_region
      %s20 = ssub.s32 8192, 8192
      %21 = vsyncadd [#allocation4], %s20
      %s22 = sshll.u32 [#allocation3], 4
      %s23 = int_to_ptr.vmem [resolvable:$true] %s22
      %28 = dma.hbm_to_vmem [thread:$0]  %s1, 8192, %s23, [#allocation4], 512, 512, 32
    $region9: #{tpu_custom_call.1} parent=1 // pred_fallthru
      _
    // Predicated region
    $region10: #{tpu_custom_call.1} parent=1 // pred_check
      _
    $region11: #{tpu_custom_call.1} parent=1 // pred_check_branch
      %30 = sbr.rel (0) target = $region13
    $region12: #{tpu_custom_call.1} parent=1 // pred_region
      _
    $region13: #{tpu_custom_call.1} parent=1 // pred_fallthru
      _
    // Predicated region
    $region14: #{tpu_custom_call.1} parent=1 // pred_check
      _
    $region15: #{tpu_custom_call.1} parent=1 // pred_check_branch
      %32 = sbr.rel (0) target = $region17
    $region16: #{tpu_custom_call.1} parent=1 // pred_region
      %s34 = ssub.s32 128, 128
      %35 = vsyncadd [#allocation7], %s34
      %s37 = sshll.u32 [#allocation6], 4
      %s38 = int_to_ptr.vmem [resolvable:$true] %s37
      %40 = dma.hbm_to_vmem [thread:$0]  %s3, 128, %s38, [#allocation7]
    $region17: #{tpu_custom_call.1} parent=1 // pred_fallthru
      _
    // Predicated region
    $region18: #{tpu_custom_call.1} parent=1 // pred_check
      _
    $region19: #{tpu_custom_call.1} parent=1 // pred_check_branch
      %42 = sbr.rel (0) target = $region21
    $region20: #{tpu_custom_call.1} parent=1 // pred_region
      %43 = dma.done [#allocation4], 8192
    $region21: #{tpu_custom_call.1} parent=1 // pred_fallthru
      _
    // Predicated region
    $region22: #{tpu_custom_call.1} parent=1 // pred_check
      _
    $region23: #{tpu_custom_call.1} parent=1 // pred_check_branch
      %45 = sbr.rel (0) target = $region25
    $region24: #{tpu_custom_call.1} parent=1 // pred_region
      %46 = dma.done [#allocation7], 128
    $region25: #{tpu_custom_call.1} parent=1 // pred_fallthru
      _
    %p47 = scmp.eq.s32.totalorder 0, 0
    // Predicated region
    $region26: #{tpu_custom_call.1} parent=1 // pred_check
      %p48 = pneg %p47
    $region27: #{tpu_custom_call.1} parent=1 // pred_check_branch
      %50 = sbr.rel (%p48) target = $region29
    $region28: #{tpu_custom_call.1} parent=1 // pred_region
      %v51 = vld [vmem:[%s2] sm:$0xf]
      %v53 = vlaneseq
      %v54 = vshrl.u32 %v53, 7
      %v55 = vsub.s32 0, %v54
      %v56 = vrot.slane %v51, %v55
      %v57 = vlaneseq
      %v58 = vshrl.u32 %v57, 7
      %v59 = vsub.s32 1, %v58
      %v60 = vrot.slane %v51, %v59
      %v61 = vlaneseq
      %v62 = vshrl.u32 %v61, 7
      %v63 = vsub.s32 2, %v62
      %v64 = vrot.slane %v51, %v63
      %v65 = vlaneseq
      %v66 = vshrl.u32 %v65, 7
      %v67 = vsub.s32 3, %v66
      %v68 = vrot.slane %v51, %v67
      %73 = vst [vmem:[#allocation2] sm:$0xff] %v56
      %74 = vst [vmem:[#allocation2 + $0x8] sm:$0xff] %v60
      %75 = vst [vmem:[#allocation2 + $0x10] sm:$0xff] %v64
      %76 = vst [vmem:[#allocation2 + $0x18] sm:$0xff] %v68
    $region29: #{tpu_custom_call.1} parent=1 // pred_fallthru
      _
    %v77 = vld [vmem:[#allocation2] sm:$0xff]
    %v78 = vld [vmem:[#allocation2 + $0x8] sm:$0xff]
    %v79 = vld [vmem:[#allocation2 + $0x10] sm:$0xff]
    %v80 = vld [vmem:[#allocation2 + $0x18] sm:$0xff]
    %v81 = vld [vmem:[%s0] sm:$0xff]
    %v82 = vld [vmem:[#allocation3] sm:$0xff]
    %v83 = vld [vmem:[#allocation3 + $0x8] sm:$0xff]
    %v84 = vld [vmem:[#allocation3 + $0x10] sm:$0xff]
    %v85 = vld [vmem:[#allocation3 + $0x18] sm:$0xff]
    %v86 = vld [vmem:[#allocation3 + $0x20] sm:$0xff]
    %v87 = vld [vmem:[#allocation3 + $0x28] sm:$0xff]
    %v88 = vld [vmem:[#allocation3 + $0x30] sm:$0xff]
    %v89 = vld [vmem:[#allocation3 + $0x38] sm:$0xff]
    %v90 = vld [vmem:[#allocation3 + $0x40] sm:$0xff]
    %v91 = vld [vmem:[#allocation3 + $0x48] sm:$0xff]
    %v92 = vld [vmem:[#allocation3 + $0x50] sm:$0xff]
    %v93 = vld [vmem:[#allocation3 + $0x58] sm:$0xff]
    %v94 = vld [vmem:[#allocation3 + $0x60] sm:$0xff]
    %v95 = vld [vmem:[#allocation3 + $0x68] sm:$0xff]
    %v96 = vld [vmem:[#allocation3 + $0x70] sm:$0xff]
    %v97 = vld [vmem:[#allocation3 + $0x78] sm:$0xff]
    %v98 = vld [vmem:[#allocation3 + $0x80] sm:$0xff]
    %v99 = vld [vmem:[#allocation3 + $0x88] sm:$0xff]
    %v100 = vld [vmem:[#allocation3 + $0x90] sm:$0xff]
    %v101 = vld [vmem:[#allocation3 + $0x98] sm:$0xff]
    %v102 = vld [vmem:[#allocation3 + $0xa0] sm:$0xff]
    %v103 = vld [vmem:[#allocation3 + $0xa8] sm:$0xff]
    %v104 = vld [vmem:[#allocation3 + $0xb0] sm:$0xff]
    %v105 = vld [vmem:[#allocation3 + $0xb8] sm:$0xff]
    %v106 = vld [vmem:[#allocation3 + $0xc0] sm:$0xff]
    %v107 = vld [vmem:[#allocation3 + $0xc8] sm:$0xff]
    %v108 = vld [vmem:[#allocation3 + $0xd0] sm:$0xff]
    %v109 = vld [vmem:[#allocation3 + $0xd8] sm:$0xff]
    %v110 = vld [vmem:[#allocation3 + $0xe0] sm:$0xff]
    %v111 = vld [vmem:[#allocation3 + $0xe8] sm:$0xff]
    %v112 = vld [vmem:[#allocation3 + $0xf0] sm:$0xff]
    %v113 = vld [vmem:[#allocation3 + $0xf8] sm:$0xff]
    %v114 = vld [vmem:[#allocation3 + $0x100] sm:$0xff]
    %v115 = vld [vmem:[#allocation3 + $0x108] sm:$0xff]
    %v116 = vld [vmem:[#allocation3 + $0x110] sm:$0xff]
    %v117 = vld [vmem:[#allocation3 + $0x118] sm:$0xff]
    %v118 = vld [vmem:[#allocation3 + $0x120] sm:$0xff]
    %v119 = vld [vmem:[#allocation3 + $0x128] sm:$0xff]
    %v120 = vld [vmem:[#allocation3 + $0x130] sm:$0xff]
    %v121 = vld [vmem:[#allocation3 + $0x138] sm:$0xff]
    %v122 = vld [vmem:[#allocation3 + $0x140] sm:$0xff]
    %v123 = vld [vmem:[#allocation3 + $0x148] sm:$0xff]
    %v124 = vld [vmem:[#allocation3 + $0x150] sm:$0xff]
    %v125 = vld [vmem:[#allocation3 + $0x158] sm:$0xff]
    %v126 = vld [vmem:[#allocation3 + $0x160] sm:$0xff]
    %v127 = vld [vmem:[#allocation3 + $0x168] sm:$0xff]
    %v128 = vld [vmem:[#allocation3 + $0x170] sm:$0xff]
    %v129 = vld [vmem:[#allocation3 + $0x178] sm:$0xff]
    %v130 = vld [vmem:[#allocation3 + $0x180] sm:$0xff]
    %v131 = vld [vmem:[#allocation3 + $0x188] sm:$0xff]
    %v132 = vld [vmem:[#allocation3 + $0x190] sm:$0xff]
    %v133 = vld [vmem:[#allocation3 + $0x198] sm:$0xff]
    %v134 = vld [vmem:[#allocation3 + $0x1a0] sm:$0xff]
    %v135 = vld [vmem:[#allocation3 + $0x1a8] sm:$0xff]
    %v136 = vld [vmem:[#allocation3 + $0x1b0] sm:$0xff]
    %v137 = vld [vmem:[#allocation3 + $0x1b8] sm:$0xff]
    %v138 = vld [vmem:[#allocation3 + $0x1c0] sm:$0xff]
    %v139 = vld [vmem:[#allocation3 + $0x1c8] sm:$0xff]
    %v140 = vld [vmem:[#allocation3 + $0x1d0] sm:$0xff]
    %v141 = vld [vmem:[#allocation3 + $0x1d8] sm:$0xff]
    %v142 = vld [vmem:[#allocation3 + $0x1e0] sm:$0xff]
    %v143 = vld [vmem:[#allocation3 + $0x1e8] sm:$0xff]
    %v144 = vld [vmem:[#allocation3 + $0x1f0] sm:$0xff]
    %v145 = vld [vmem:[#allocation3 + $0x1f8] sm:$0xff]
    %146 = vmatprep.subr.mxu0 %v143
    %147 = vmatpush1.msra.mxu0 %v142
    %148 = vmatprep.subr.mxu0 %v139
    %149 = vmatpush1.msra.mxu0 %v138
    %150 = vmatprep.subr.mxu0 %v135
    %151 = vmatpush1.msra.mxu0 %v134
    %152 = vmatprep.subr.mxu0 %v131
    %153 = vmatpush1.msra.mxu0 %v130
    %154 = vmatprep.subr.mxu0 %v127
    %155 = vmatpush1.msra.mxu0 %v126
    %156 = vmatprep.subr.mxu0 %v123
    %157 = vmatpush1.msra.mxu0 %v122
    %158 = vmatprep.subr.mxu0 %v119
    %159 = vmatpush1.msra.mxu0 %v118
    %160 = vmatprep.subr.mxu0 %v115
    %161 = vmatpush1.msra.mxu0 %v114
    %162 = vmatprep.subr.mxu0 %v111
    %163 = vmatpush1.msra.mxu0 %v110
    %164 = vmatprep.subr.mxu0 %v107
    %165 = vmatpush1.msra.mxu0 %v106
    %166 = vmatprep.subr.mxu0 %v103
    %167 = vmatpush1.msra.mxu0 %v102
    %168 = vmatprep.subr.mxu0 %v99
    %169 = vmatpush1.msra.mxu0 %v98
    %170 = vmatprep.subr.mxu0 %v95
    %171 = vmatpush1.msra.mxu0 %v94
    %172 = vmatprep.subr.mxu0 %v91
    %173 = vmatpush1.msra.mxu0 %v90
    %174 = vmatprep.subr.mxu0 %v87
    %175 = vmatpush1.msra.mxu0 %v86
    %176 = vmatprep.subr.mxu0 %v83
    %177 = vmatpush1.msra.mxu0 %v82
    %178 = vmatprep.subr.mxu0 0.0
    %179 = vmatpush2.msra.mxu0 0.0
    %180 = vmatprep.subr.mxu0 0.0
    %181 = vmatpush2.msra.mxu0 0.0
    %182 = vmatprep.subr.mxu0 0.0
    %183 = vmatpush2.msra.mxu0 0.0
    %184 = vmatprep.subr.mxu0 0.0
    %185 = vmatpush2.msra.mxu0 0.0
    %186 = vmatprep.subr.mxu0 0.0
    %187 = vmatpush2.msra.mxu0 0.0
    %188 = vmatprep.subr.mxu0 0.0
    %189 = vmatpush2.msra.mxu0 0.0
    %190 = vmatprep.subr.mxu0 0.0
    %191 = vmatpush2.msra.mxu0 0.0
    %192 = vmatprep.subr.mxu0 0.0
    %193 = vmatpush2.msra.mxu0 0.0
    %194 = vmatprep.subr.mxu0 0.0
    %195 = vmatpush2.msra.mxu0 0.0
    %196 = vmatprep.subr.mxu0 0.0
    %197 = vmatpush2.msra.mxu0 0.0
    %198 = vmatprep.subr.mxu0 0.0
    %199 = vmatpush2.msra.mxu0 0.0
    %200 = vmatprep.subr.mxu0 0.0
    %201 = vmatpush2.msra.mxu0 0.0
    %202 = vmatprep.subr.mxu0 0.0
    %203 = vmatpush2.msra.mxu0 0.0
    %204 = vmatprep.subr.mxu0 0.0
    %205 = vmatpush2.msra.mxu0 0.0
    %206 = vmatprep.subr.mxu0 0.0
    %207 = vmatpush2.msra.mxu0 0.0
    %208 = vmatprep.subr.mxu0 0.0
    %209 = vmatpush2.msra.mxu0 0.0
    %210 = vmatprep.mubr.f32.mxu0 0.0
    %211 = vmatmul.mubr.f32.gmra.mxu0 %v81
    %v212 = vpop.f32.mrf.mxu0
    %v213 = vadd.f32 0.0, %v212
    %v214 = vpop.f32.mrf.mxu0
    %v215 = vadd.f32 0.0, %v214
    %216 = vdwg.mxu0
    %217 = vmatprep.subr.mxu0 %v145
    %218 = vmatpush1.msra.mxu0 %v144
    %219 = vmatprep.subr.mxu0 %v141
    %220 = vmatpush1.msra.mxu0 %v140
    %221 = vmatprep.subr.mxu0 %v137
    %222 = vmatpush1.msra.mxu0 %v136
    %223 = vmatprep.subr.mxu0 %v133
    %224 = vmatpush1.msra.mxu0 %v132
    %225 = vmatprep.subr.mxu0 %v129
    %226 = vmatpush1.msra.mxu0 %v128
    %227 = vmatprep.subr.mxu0 %v125
    %228 = vmatpush1.msra.mxu0 %v124
    %229 = vmatprep.subr.mxu0 %v121
    %230 = vmatpush1.msra.mxu0 %v120
    %231 = vmatprep.subr.mxu0 %v117
    %232 = vmatpush1.msra.mxu0 %v116
    %233 = vmatprep.subr.mxu0 %v113
    %234 = vmatpush1.msra.mxu0 %v112
    %235 = vmatprep.subr.mxu0 %v109
    %236 = vmatpush1.msra.mxu0 %v108
    %237 = vmatprep.subr.mxu0 %v105
    %238 = vmatpush1.msra.mxu0 %v104
    %239 = vmatprep.subr.mxu0 %v101
    %240 = vmatpush1.msra.mxu0 %v100
    %241 = vmatprep.subr.mxu0 %v97
    %242 = vmatpush1.msra.mxu0 %v96
    %243 = vmatprep.subr.mxu0 %v93
    %244 = vmatpush1.msra.mxu0 %v92
    %245 = vmatprep.subr.mxu0 %v89
    %246 = vmatpush1.msra.mxu0 %v88
    %247 = vmatprep.subr.mxu0 %v85
    %248 = vmatpush1.msra.mxu0 %v84
    %249 = vmatprep.subr.mxu0 0.0
    %250 = vmatpush2.msra.mxu0 0.0
    %251 = vmatprep.subr.mxu0 0.0
    %252 = vmatpush2.msra.mxu0 0.0
    %253 = vmatprep.subr.mxu0 0.0
    %254 = vmatpush2.msra.mxu0 0.0
    %255 = vmatprep.subr.mxu0 0.0
    %256 = vmatpush2.msra.mxu0 0.0
    %257 = vmatprep.subr.mxu0 0.0
    %258 = vmatpush2.msra.mxu0 0.0
    %259 = vmatprep.subr.mxu0 0.0
    %260 = vmatpush2.msra.mxu0 0.0
    %261 = vmatprep.subr.mxu0 0.0
    %262 = vmatpush2.msra.mxu0 0.0
    %263 = vmatprep.subr.mxu0 0.0
    %264 = vmatpush2.msra.mxu0 0.0
    %265 = vmatprep.subr.mxu0 0.0
    %266 = vmatpush2.msra.mxu0 0.0
    %267 = vmatprep.subr.mxu0 0.0
    %268 = vmatpush2.msra.mxu0 0.0
    %269 = vmatprep.subr.mxu0 0.0
    %270 = vmatpush2.msra.mxu0 0.0
    %271 = vmatprep.subr.mxu0 0.0
    %272 = vmatpush2.msra.mxu0 0.0
    %273 = vmatprep.subr.mxu0 0.0
    %274 = vmatpush2.msra.mxu0 0.0
    %275 = vmatprep.subr.mxu0 0.0
    %276 = vmatpush2.msra.mxu0 0.0
    %277 = vmatprep.subr.mxu0 0.0
    %278 = vmatpush2.msra.mxu0 0.0
    %279 = vmatprep.subr.mxu0 0.0
    %280 = vmatpush2.msra.mxu0 0.0
    %281 = vmatprep.mubr.f32.mxu0 0.0
    %282 = vmatmul.mubr.f32.gmra.mxu0 %v81
    %v283 = vpop.f32.mrf.mxu0
    %v284 = vadd.f32 0.0, %v283
    %v285 = vpop.f32.mrf.mxu0
    %v286 = vadd.f32 0.0, %v285
    %287 = vdwg.mxu0
    %v288 = vadd.f32 %v77, %v213
    %v289 = vadd.f32 %v78, %v215
    %v290 = vadd.f32 %v79, %v284
    %v291 = vadd.f32 %v80, %v286
    %292 = vst [vmem:[#allocation2] sm:$0xff] %v288
    %293 = vst [vmem:[#allocation2 + $0x8] sm:$0xff] %v289
    %294 = vst [vmem:[#allocation2 + $0x10] sm:$0xff] %v290
    %295 = vst [vmem:[#allocation2 + $0x18] sm:$0xff] %v291
    // Predicated region
    $region30: #{tpu_custom_call.1} parent=1 // pred_check
      %p296 = pneg %p47
    $region31: #{tpu_custom_call.1} parent=1 // pred_check_branch
      %298 = sbr.rel (%p296) target = $region33
    $region32: #{tpu_custom_call.1} parent=1 // pred_region
      %v299 = vld [vmem:[#allocation2] sm:$0xff]
      %v300 = vld [vmem:[#allocation2 + $0x8] sm:$0xff]
      %v301 = vld [vmem:[#allocation2 + $0x10] sm:$0xff]
      %v302 = vld [vmem:[#allocation2 + $0x18] sm:$0xff]
      %v303 = vmul.f32 %v299, 0.2
      %v304 = vadd.f32 %v303, 0.5
      %v305 = vmax.f32 %v304, 0.0
      %v306 = vmin.f32 %v305, 1.0
      %v307 = vmul.f32 %v300, 0.2
      %v308 = vadd.f32 %v307, 0.5
      %v309 = vmax.f32 %v308, 0.0
      %v310 = vmin.f32 %v309, 1.0
      %v311 = vtanh.pop %v301
      %v312 = vmul.f32 %v302, 0.2
      %v313 = vadd.f32 %v312, 0.5
      %v314 = vmax.f32 %v313, 0.0
      %v315 = vmin.f32 %v314, 1.0
      %v316 = vld [vmem:[#allocation6] sm:$0xff]
      %v317 = vmul.f32 %v310, %v316
      %v318 = vmul.f32 %v306, %v311
      %v319 = vadd.f32 %v317, %v318
      %v320 = vtanh.pop %v319
      %v321 = vmul.f32 %v315, %v320
      %322 = vst [vmem:[#allocation9] sm:$0xff] %v319
      %323 = vst [vmem:[#allocation8] sm:$0xff] %v321
    $region33: #{tpu_custom_call.1} parent=1 // pred_fallthru
      _
    // Predicated region
    $region34: #{tpu_custom_call.1} parent=1 // pred_check
      _
    $region35: #{tpu_custom_call.1} parent=1 // pred_check_branch
      %325 = sbr.rel (0) target = $region37
    $region36: #{tpu_custom_call.1} parent=1 // pred_region
      %s327 = ssub.s32 128, 128
      %328 = vsyncadd [#allocation5], %s327
      %s330 = sshll.u32 [#allocation8], 4
      %s331 = int_to_ptr.vmem [resolvable:$true] %s330
      %333 = dma.vmem_to_hbm [thread:$0]  %s331, 128, %s4, [#allocation5]
    $region37: #{tpu_custom_call.1} parent=1 // pred_fallthru
      _
    // Predicated region
    $region38: #{tpu_custom_call.1} parent=1 // pred_check
      _
    $region39: #{tpu_custom_call.1} parent=1 // pred_check_branch
      %335 = sbr.rel (0) target = $region41
    $region40: #{tpu_custom_call.1} parent=1 // pred_region
      %s337 = ssub.s32 128, 128
      %338 = vsyncadd [#allocation10], %s337
      %s340 = sshll.u32 [#allocation9], 4
      %s341 = int_to_ptr.vmem [resolvable:$true] %s340
      %343 = dma.vmem_to_hbm [thread:$0]  %s341, 128, %s5, [#allocation10]
    $region41: #{tpu_custom_call.1} parent=1 // pred_fallthru
      _
    // Predicated region
    $region42: #{tpu_custom_call.1} parent=1 // pred_check
      _
    $region43: #{tpu_custom_call.1} parent=1 // pred_check_branch
      %345 = sbr.rel (0) target = $region45
    $region44: #{tpu_custom_call.1} parent=1 // pred_region
      %346 = dma.done [#allocation5], 128
    $region45: #{tpu_custom_call.1} parent=1 // pred_fallthru
      _
    // Predicated region
    $region46: #{tpu_custom_call.1} parent=1 // pred_check
      _
    $region47: #{tpu_custom_call.1} parent=1 // pred_check_branch
      %348 = sbr.rel (0) target = $region49
    $region48: #{tpu_custom_call.1} parent=1 // pred_region
      %349 = dma.done [#allocation10], 128
    $region49: #{tpu_custom_call.1} parent=1 // pred_fallthru
      _
    %350 = vsyncpa [#allocation4], 1
    %351 = vsyncpa [#allocation7], 1
    %352 = vsyncpa [#allocation5], 1
    %353 = vsyncpa [#allocation10], 1

</llo_original>
